<compile_context>
chip_gen: v5e
topology: v5e:2x2
jax: 0.10.0
libtpu: 0.0.40
codegen_flags: <defaults>
</compile_context>

<pallas_src>
import functools

import jax
import jax.numpy as jnp
from jax import lax
from jax.experimental import pallas as pl
from jax.experimental.pallas import tpu as pltpu


# ---------------------------------------------------------------------------
# Kernel 1: hoisted, time-parallel input projection
#           cc_x[t] = WxT @ x_col[t] + bias        (lane dim = B*HW)
# ---------------------------------------------------------------------------
def _xproj_kernel(xcolT_ref, wxT_ref, b_ref, out_ref):
    out_ref[...] = (
        jnp.dot(wxT_ref[...], xcolT_ref[...],
                preferred_element_type=jnp.float32)
        + b_ref[...])                               # (4Hc,1) lane-broadcast


def _x_projection(x_colT, wxT, b_col):
    """x_colT: (T, K*K*Cin, B*HW) bf16; wxT: (4Hc, K*K*Cin) bf16; b_col: (4Hc,1) f32."""
    T, KKCin, N = x_colT.shape
    C4 = wxT.shape[0]

    grid_spec = pltpu.PrefetchScalarGridSpec(
        num_scalar_prefetch=0,
        grid=(T,),
        in_specs=[
            pl.BlockSpec((None, KKCin, N), lambda t: (t, 0, 0)),
            pl.BlockSpec((C4, KKCin), lambda t: (0, 0)),
            pl.BlockSpec((C4, 1), lambda t: (0, 0)),
        ],
        out_specs=pl.BlockSpec((None, C4, N), lambda t: (t, 0, 0)),
    )
    return pl.pallas_call(
        _xproj_kernel,
        out_shape=jax.ShapeDtypeStruct((T, C4, N), jnp.float32),
        grid_spec=grid_spec,
        compiler_params=pltpu.CompilerParams(
            dimension_semantics=("parallel",)),
    )(x_colT, wxT, b_col)


# ---------------------------------------------------------------------------
# Kernel 2: sequential recurrence over time, parallel over batch
# ---------------------------------------------------------------------------
def _recurrent_kernel(xproj_ref, whT_ref, mask_ref,        # inputs
                      out_ref, c_ref,                       # outputs (c = resident carry)
                      h_ref, col_ref,                       # scratch
                      *, H, W, Hc, K):
    t = pl.program_id(1)
    HW = H * W
    P = K // 2

    # NOTE: carry correctness requires t to be the LAST ("arbitrary") grid axis
    # so that, for a fixed b, timesteps run consecutively and the resident c
    # output block plus the h scratch persist between them.
    @pl.when(t == 0)
    def _init():
        h_ref[...] = jnp.zeros_like(h_ref)
        c_ref[...] = jnp.zeros_like(c_ref)

    # ---- im2col of h_{t-1}: lane-dense, sublane-aligned (Hc, HW) slabs -----
    # Spatial (dy, dx) shift == lane rotation; image border == {0,1} mask.
    h = h_ref[...]                                           # (Hc, HW) f32
    for ky in range(K):
        for kx in range(K):
            tap = ky * K + kx
            dy, dx = ky - P, kx - P
            s = dy * W + dx                                  # lane shift amount
            if s == 0:
                val = h                                      # center tap: identity, mask == 1
            else:
                shifted = pltpu.roll(h, shift=(-s) % HW, axis=1)   # [:, i] = h[:, i + s]
                val = shifted * mask_ref[tap]                # (Hc,HW) * (1,HW) border mask
            col_ref[tap * Hc:(tap + 1) * Hc, :] = val.astype(col_ref.dtype)

    # ---- single bf16 MXU matmul; x contribution (incl. bias) was hoisted ---
    cc = xproj_ref[...] + jnp.dot(whT_ref[...], col_ref[...],
                                  preferred_element_type=jnp.float32)

    ifo = jax.nn.sigmoid(cc[:3 * Hc, :])                     # one fused sigmoid for i,f,o
    i = ifo[0 * Hc:1 * Hc, :]
    f = ifo[1 * Hc:2 * Hc, :]
    o = ifo[2 * Hc:3 * Hc, :]
    g = jnp.tanh(cc[3 * Hc:4 * Hc, :])

    c_next = f * c_ref[...] + i * g
    h_next = o * jnp.tanh(c_next)

    c_ref[...] = c_next                                      # resident cell-state carry
    out_ref[...] = h_next                                    # lane-dense hidden output
    h_ref[...] = h_next                                      # next step's matmul operand


def _recurrence(xproj, whT, border_mask, *, B, T, H, W, Hc, K):
    """xproj: (T, 4Hc, B*HW) f32; whT: (4Hc, K*K*Hc) bf16; border_mask: (K*K, 1, HW) f32."""
    HW = H * W
    KKHc = K * K * Hc
    kernel = functools.partial(_recurrent_kernel, H=H, W=W, Hc=Hc, K=K)

    grid_spec = pltpu.PrefetchScalarGridSpec(
        num_scalar_prefetch=0,
        grid=(B, T),                         # t MUST remain the innermost axis
        in_specs=[
            pl.BlockSpec((None, 4 * Hc, HW), lambda b, t: (t, 0, b)),
            pl.BlockSpec((4 * Hc, KKHc), lambda b, t: (0, 0)),
            pl.BlockSpec((K * K, 1, HW), lambda b, t: (0, 0, 0)),
        ],
        out_specs=[
            pl.BlockSpec((None, None, Hc, HW), lambda b, t: (t, b, 0, 0)),
            pl.BlockSpec((None, Hc, HW), lambda b, t: (b, 0, 0)),    # resident c
        ],
        scratch_shapes=[
            pltpu.VMEM((Hc, HW), jnp.float32),       # h_{t-1}
            pltpu.VMEM((KKHc, HW), jnp.bfloat16),    # im2col(h) staged for the MXU
        ],
    )

    out, c_last = pl.pallas_call(
        kernel,
        out_shape=(jax.ShapeDtypeStruct((T, B, Hc, HW), jnp.float32),
                   jax.ShapeDtypeStruct((B, Hc, HW), jnp.float32)),
        grid_spec=grid_spec,
        compiler_params=pltpu.CompilerParams(
            dimension_semantics=("parallel", "arbitrary")),
    )(xproj, whT, border_mask)
    return out, c_last


# ---------------------------------------------------------------------------
# Wrapper mirroring ConvLSTM.forward (num_layers=1, batch_first=True,
# return_all_layers=False, hidden_state=None)
# ---------------------------------------------------------------------------
def conv_lstm_forward(x_btchw, w_conv, bias, *, hidden_channels, kernel_size):
    """x_btchw: (B, T, Cin, H, W); w_conv: (4*Hc, Cin+Hc, K, K); bias: (4*Hc,).

    Returns ([layer_output (B,T,Hc,H,W)], [(h_last (B,Hc,H,W), c_last (B,Hc,H,W))]).
    """
    B, T, Cin, H, W = x_btchw.shape
    Hc, K = hidden_channels, kernel_size
    P = K // 2
    HW = H * W

    # ---- layout plumbing (static, pure-JAX, outside the kernels) ----------
    # Weights: (4Hc, C, K, K) -> (4Hc, tap*C + c)  (tap-major, channel-minor).
    wxT = jnp.transpose(w_conv[:, :Cin], (0, 2, 3, 1)).reshape(
        4 * Hc, K * K * Cin).astype(jnp.bfloat16)
    whT = jnp.transpose(w_conv[:, Cin:], (0, 2, 3, 1)).reshape(
        4 * Hc, K * K * Hc).astype(jnp.bfloat16)
    b_col = bias.reshape(4 * Hc, 1).astype(jnp.float32)

    # x im2col in transposed layout: (T, K*K*Cin, B*HW), bf16 MXU operand.
    x_t = jnp.transpose(x_btchw, (1, 0, 2, 3, 4)).astype(jnp.float32)   # (T,B,Cin,H,W)
    x_pad = jnp.pad(x_t, ((0, 0), (0, 0), (0, 0), (P, P), (P, P)))
    taps = [x_pad[:, :, :, ky:ky + H, kx:kx + W]
            for ky in range(K) for kx in range(K)]
    x_col = jnp.stack(taps, axis=2).reshape(T, B, K * K * Cin, HW)
    x_colT = jnp.transpose(x_col, (0, 2, 1, 3)).reshape(
        T, K * K * Cin, B * HW).astype(jnp.bfloat16)
    # TODO(synk): for large H*W, skip this 9x im2col blowup (use lax.conv for
    #             the x projection) to avoid being HBM-bound on the hoist.

    # Per-tap {0,1} border masks (one (1, HW) row per tap), built once.
    yy, xx = jnp.meshgrid(jnp.arange(H), jnp.arange(W), indexing="ij")
    mask_rows = []
    for ky in range(K):
        for kx in range(K):
            dy, dx = ky - P, kx - P
            valid = ((yy + dy >= 0) & (yy + dy < H) &
                     (xx + dx >= 0) & (xx + dx < W))
            mask_rows.append(valid.reshape(1, HW))
    border_mask = jnp.stack(mask_rows, axis=0).astype(jnp.float32)      # (K*K, 1, HW)

    # ---- 1) hoisted, time-parallel input projection (includes the bias) ----
    xproj = _x_projection(x_colT, wxT, b_col)                           # (T, 4Hc, B*HW)

    # ---- 2) sequential recurrence ------------------------------------------
    out_t, c_last = _recurrence(xproj, whT, border_mask,
                                B=B, T=T, H=H, W=W, Hc=Hc, K=K)

    layer_output = jnp.transpose(out_t.reshape(T, B, Hc, H, W), (1, 0, 2, 3, 4))
    h_last = layer_output[:, -1]                                        # (B, Hc, H, W)
    c_last = c_last.reshape(B, Hc, H, W)                                # (B, Hc, H, W)
    return [layer_output], [(h_last, c_last)]


# ---------------------------------------------------------------------------
# Pure-JAX reference (same math as the PyTorch module)
# ---------------------------------------------------------------------------
def _reference_convlstm(x_btchw, w_conv, bias, *, hidden_channels, kernel_size):
    B, T, Cin, H, W = x_btchw.shape
    Hc = hidden_channels
    w_hwio = jnp.transpose(w_conv, (2, 3, 1, 0))            # (K, K, Ctot, 4Hc)
    h = jnp.zeros((B, H, W, Hc), jnp.float32)
    c = jnp.zeros((B, H, W, Hc), jnp.float32)
    outs = []
    for t in range(T):
        xt = jnp.transpose(x_btchw[:, t], (0, 2, 3, 1))
        comb = jnp.concatenate([xt, h], axis=-1)
        cc = lax.conv_general_dilated(
            comb, w_hwio, (1, 1), "SAME",
            dimension_numbers=("NHWC", "HWIO", "NHWC"),
            precision=lax.Precision.HIGHEST) + bias
        i = jax.nn.sigmoid(cc[..., 0 * Hc:1 * Hc])
        f = jax.nn.sigmoid(cc[..., 1 * Hc:2 * Hc])
        o = jax.nn.sigmoid(cc[..., 2 * Hc:3 * Hc])
        g = jnp.tanh(cc[..., 3 * Hc:4 * Hc])
        c = f * c + i * g
        h = o * jnp.tanh(c)
        outs.append(h)
    out = jnp.stack(outs, axis=1)                            # (B, T, H, W, Hc)
    return (jnp.transpose(out, (0, 1, 4, 2, 3)),
            jnp.transpose(h, (0, 3, 1, 2)),
            jnp.transpose(c, (0, 3, 1, 2)))


if __name__ == "__main__":
    B, T, Cin, H, W = 2, 8, 4, 16, 16
    Hc, K = 32, 3

    key = jax.random.PRNGKey(0)
    k_x, k_w, k_b = jax.random.split(key, 3)

    x = jax.random.normal(k_x, (B, T, Cin, H, W), jnp.float32)

    # Deterministic Conv2d-style init (uniform(-1/sqrt(fan_in), 1/sqrt(fan_in))).
    fan_in = (Cin + Hc) * K * K
    bound = float(fan_in) ** -0.5
    w_conv = jax.random.uniform(k_w, (4 * Hc, Cin + Hc, K, K), jnp.float32,
                                -bound, bound)
    bias = jax.random.uniform(k_b, (4 * Hc,), jnp.float32, -bound, bound)

    layer_outputs, last_states = conv_lstm_forward(
        x, w_conv, bias, hidden_channels=Hc, kernel_size=K)
    out = jax.block_until_ready(layer_outputs[0])
    h_last, c_last = last_states[0]
    jax.block_until_ready(h_last)
    jax.block_until_ready(c_last)

    ref_out, ref_h, ref_c = _reference_convlstm(
        x, w_conv, bias, hidden_channels=Hc, kernel_size=K)

    assert out.shape == (B, T, Hc, H, W)
    assert h_last.shape == (B, Hc, H, W) and c_last.shape == (B, Hc, H, W)
    assert jnp.allclose(out, ref_out, atol=1e-2, rtol=1e-2)
    assert jnp.allclose(h_last, ref_h, atol=1e-2, rtol=1e-2)
    assert jnp.allclose(c_last, ref_c, atol=1e-2, rtol=1e-2)

    print("KERNEL_OK")
</pallas_src>

<mosaic_0001>
module attributes {stable_mosaic.version = 11 : i64} {
  func.func @_xproj_kernel(%arg0: i32, %arg1: memref<1x36x512xbf16, #tpu.memory_space<vmem>>, %arg2: memref<128x36xbf16, #tpu.memory_space<vmem>>, %arg3: memref<128x1xf32, #tpu.memory_space<vmem>>, %arg4: memref<1x128x512xf32, #tpu.memory_space<vmem>>) attributes {dimension_semantics = [#tpu.dimension_semantics<parallel>], iteration_bounds = array<i64: 8>, scalar_prefetch = 0 : i64, scratch_operands = 0 : i64, tpu.core_type = #tpu.core_type<tc>, window_params = [{transform_indices = @transform_0, window_bounds = array<i64: 1, 36, 512>}, {pipeline_mode = #tpu.pipeline_mode<synchronous>, transform_indices = @transform_1, window_bounds = array<i64: 128, 36>}, {pipeline_mode = #tpu.pipeline_mode<synchronous>, transform_indices = @transform_2, window_bounds = array<i64: 128, 1>}, {transform_indices = @transform_3, window_bounds = array<i64: 1, 128, 512>}]} {
    %c0 = arith.constant 0 : index
    %c0_0 = arith.constant 0 : index
    %0 = vector.load %arg2[%c0, %c0_0] : memref<128x36xbf16, #tpu.memory_space<vmem>>, vector<128x36xbf16>
    %c0_1 = arith.constant 0 : index
    %c0_2 = arith.constant 0 : index
    %c0_3 = arith.constant 0 : index
    %1 = vector.load %arg1[%c0_1, %c0_2, %c0_3] : memref<1x36x512xbf16, #tpu.memory_space<vmem>>, vector<1x36x512xbf16>
    %2 = vector.shape_cast %1 : vector<1x36x512xbf16> to vector<36x512xbf16>
    %cst = arith.constant dense<0.000000e+00> : vector<128x512xf32>
    %3 = tpu.matmul %0, %2, %cst {dimension_numbers = #tpu.dot_dimension_numbers<[1], [0], [0], [1], [0, 0, 1, 1], [], []>} : vector<128x36xbf16>, vector<36x512xbf16>, vector<128x512xf32> -> vector<128x512xf32>
    %c0_4 = arith.constant 0 : index
    %c0_5 = arith.constant 0 : index
    %4 = vector.load %arg3[%c0_4, %c0_5] : memref<128x1xf32, #tpu.memory_space<vmem>>, vector<128x1xf32>
    %5 = vector.broadcast %4 : vector<128x1xf32> to vector<128x512xf32>
    %6 = arith.addf %3, %5 : vector<128x512xf32>
    %c0_6 = arith.constant 0 : index
    %c0_7 = arith.constant 0 : index
    %c0_8 = arith.constant 0 : index
    %7 = vector.load %arg4[%c0_6, %c0_7, %c0_8] : memref<1x128x512xf32, #tpu.memory_space<vmem>>, vector<1x128x512xf32>
    %8 = vector.shape_cast %7 : vector<1x128x512xf32> to vector<128x512xf32>
    %9 = vector.shape_cast %6 : vector<128x512xf32> to vector<1x128x512xf32>
    tpu.vector_store %arg4[%c0_6, %c0_7, %c0_8], %9 {strides = array<i32>} : memref<1x128x512xf32, #tpu.memory_space<vmem>>, vector<1x128x512xf32>,
    return
  }
  func.func @transform_0(%arg0: i32) -> (i32, i32, i32) {
    %c0_i32 = arith.constant 0 : i32
    %c0_i32_0 = arith.constant 0 : i32
    %c0_i32_1 = arith.constant 0 : i32
    return %arg0, %c0_i32, %c0_i32_0 : i32, i32, i32
  }
  func.func @transform_1(%arg0: i32) -> (i32, i32) {
    %c0_i32 = arith.constant 0 : i32
    %c0_i32_0 = arith.constant 0 : i32
    %c0_i32_1 = arith.constant 0 : i32
    return %c0_i32, %c0_i32_0 : i32, i32
  }
  func.func @transform_2(%arg0: i32) -> (i32, i32) {
    %c0_i32 = arith.constant 0 : i32
    %c0_i32_0 = arith.constant 0 : i32
    %c0_i32_1 = arith.constant 0 : i32
    return %c0_i32, %c0_i32_0 : i32, i32
  }
  func.func @transform_3(%arg0: i32) -> (i32, i32, i32) {
    %c0_i32 = arith.constant 0 : i32
    %c0_i32_0 = arith.constant 0 : i32
    %c0_i32_1 = arith.constant 0 : i32
    return %arg0, %c0_i32, %c0_i32_0 : i32, i32, i32
  }
}

</mosaic_0001>

<llo_original>
// kernel: tpu_custom_call.1
$region0: #{tpu_custom_call.1}
  #allocation0 [shape = 'u32[]', space=smem, size = 0x4, offset = 0x4, fixed_abs, tag = 'smem constant byte address 0x4 - core index']
  #allocation1 [shape = 'u32[72,128]{1,0:T(1,128)}', space=vmem, size = 0x9000, scoped, tag = 'internal scratch']
  %s0 = inlined_call_operand.vmem [shape: bf16[8,36,512], index: 0, kind: input, shape index: {}]
  %s1 = inlined_call_operand.vmem [shape: bf16[128,36], index: 1, kind: input, shape index: {}]
  %s2 = inlined_call_operand.vmem [shape: f32[128,1], index: 2, kind: input, shape index: {}]
  %s3 = inlined_call_operand.hbm [shape: f32[8,128,512], index: 3, kind: output, shape index: {}]
  %s4 = sld [smem:[#allocation0]]
  $region45: #{tpu_custom_call.1} parent=0
    _
  %s6 = ssub.s32 1, %s4
  %s7 = scalar_select 0, %s6, %s4
  $region1: #{tpu_custom_call.1} parent=0
    #allocation2 [shape = 'u8[524288]{0}', space=vmem, size = 0x80000, scoped, tag = 'output window, operand 0']
    #allocation3 [shape = 's32[2]{0}', space=sflag, size = 0x8, scoped, tag = 'scoped memory for tpu_custom_call.1']
    %8 = vsyncpa [#allocation3], 0
    %s9 = scalar_lea.sflag [#allocation3], 1
    %10 = vsyncpa %s9, 0
    loop: start=0, step=1, limit=10
    $region2: #{tpu_custom_call.1} parent=1 // loop_pre_header
      _
    $region3: #{tpu_custom_call.1} parent=1 // loop_header
      %s12 = sphi 0, %s16
      %p13 = scmp.ge.s32.totalorder %s12, 10
      %s22 = sphi 0, %s24
      %s25 = sphi 0, %s22
      %s26 = sphi 0, %s25
      %s42 = sphi 0, %s26
      %s46 = sphi 0, %s46
      %s48 = sphi 0, %s46
      %s49 = sphi 0, %s48
      %s63 = sphi 0, %s49
      %s67 = sphi 0, %s67
      %s69 = sphi 0, %s67
      %s70 = sphi 0, %s69
      %s84 = sphi 0, %s70
      %s90 = sphi 0, %s92
      %s93 = sphi 0, %s90
      %s94 = sphi 0, %s93
      %s110 = sphi 0, %s94
    $region4: #{tpu_custom_call.1} parent=1 // loop_header_branch
      %15 = sbr.rel (%p13) target = $region8
    $region5: #{tpu_custom_call.1} parent=1 // loop_body
      %s17 = ssub.s32 %s12, 1
      %s18 = ssub.s32 %s12, 2
      %s19 = sadd.s32 %s12, 1
      %s20 = ssub.s32 %s12, %s19
      %p21 = scmp.eq.s32.totalorder %s20, 0
      %s23 = sadd.s32 %s22, 1
      %s24 = scalar_select %p21, %s22, %s23
      %p27 = pneg %p21
      %p28 = scmp.eq.s32.totalorder %s12, 7
      %p29 = por %p27, %p28
      %p30 = scmp.ne.s32.totalorder %s22, %s25
      %p31 = scmp.eq.s32.totalorder %s12, 0
      %p32 = por %p30, %p31
      %p33 = scmp.ne.s32.totalorder %s22, %s25
      %p34 = scmp.eq.s32.totalorder %s17, 7
      %p35 = por %p33, %p34
      %p36 = scmp.ne.s32.totalorder %s25, %s26
      %p37 = scmp.eq.s32.totalorder %s17, 0
      %p38 = por %p36, %p37
      %p39 = scmp.ne.s32.totalorder %s25, %s26
      %p40 = scmp.eq.s32.totalorder %s18, 7
      %p41 = por %p39, %p40
      %p43 = scmp.ne.s32.totalorder %s26, %s42
      %p44 = scmp.eq.s32.totalorder %s18, 0
      %p45 = por %p43, %p44
      %s47 = sadd.s32 %s46, 1
      %p50 = scmp.eq.s32.totalorder %s12, 7
      %p51 = scmp.ne.s32.totalorder %s46, %s48
      %p52 = scmp.eq.s32.totalorder %s12, 0
      %p53 = por %p51, %p52
      %p54 = scmp.ne.s32.totalorder %s46, %s48
      %p55 = scmp.eq.s32.totalorder %s17, 7
      %p56 = por %p54, %p55
      %p57 = scmp.ne.s32.totalorder %s48, %s49
      %p58 = scmp.eq.s32.totalorder %s17, 0
      %p59 = por %p57, %p58
      %p60 = scmp.ne.s32.totalorder %s48, %s49
      %p61 = scmp.eq.s32.totalorder %s18, 7
      %p62 = por %p60, %p61
      %p64 = scmp.ne.s32.totalorder %s49, %s63
      %p65 = scmp.eq.s32.totalorder %s18, 0
      %p66 = por %p64, %p65
      %s68 = sadd.s32 %s67, 1
      %p71 = scmp.eq.s32.totalorder %s12, 7
      %p72 = scmp.ne.s32.totalorder %s67, %s69
      %p73 = scmp.eq.s32.totalorder %s12, 0
      %p74 = por %p72, %p73
      %p75 = scmp.ne.s32.totalorder %s67, %s69
      %p76 = scmp.eq.s32.totalorder %s17, 7
      %p77 = por %p75, %p76
      %p78 = scmp.ne.s32.totalorder %s69, %s70
      %p79 = scmp.eq.s32.totalorder %s17, 0
      %p80 = por %p78, %p79
      %p81 = scmp.ne.s32.totalorder %s69, %s70
      %p82 = scmp.eq.s32.totalorder %s18, 7
      %p83 = por %p81, %p82
      %p85 = scmp.ne.s32.totalorder %s70, %s84
      %p86 = scmp.eq.s32.totalorder %s18, 0
      %p87 = por %p85, %p86
      %s88 = ssub.s32 %s12, %s19
      %p89 = scmp.eq.s32.totalorder %s88, 0
      %s91 = sadd.s32 %s90, 1
      %s92 = scalar_select %p89, %s90, %s91
      %p95 = pneg %p89
      %p96 = scmp.eq.s32.totalorder %s12, 7
      %p97 = por %p95, %p96
      %p98 = scmp.ne.s32.totalorder %s90, %s93
      %p99 = scmp.eq.s32.totalorder %s12, 0
      %p100 = por %p98, %p99
      %p101 = scmp.ne.s32.totalorder %s90, %s93
      %p102 = scmp.eq.s32.totalorder %s17, 7
      %p103 = por %p101, %p102
      %p104 = scmp.ne.s32.totalorder %s93, %s94
      %p105 = scmp.eq.s32.totalorder %s17, 0
      %p106 = por %p104, %p105
      %p107 = scmp.ne.s32.totalorder %s93, %s94
      %p108 = scmp.eq.s32.totalorder %s18, 7
      %p109 = por %p107, %p108
      %p111 = scmp.ne.s32.totalorder %s94, %s110
      %p112 = scmp.eq.s32.totalorder %s18, 0
      %p113 = por %p111, %p112
      %p114 = scmp.le.s32.totalorder 1, %s12
      %p115 = scmp.lt.s32.totalorder %s12, 9
      %p116 = pnand %p114, %p115
      %p117 = pneg %p116
      // Predicated region
      $region9: #{tpu_custom_call.1} parent=5 // pred_check
        _
      $region10: #{tpu_custom_call.1} parent=5 // pred_check_branch
        %119 = sbr.rel (%p116) target = $region12
      $region11: #{tpu_custom_call.1} parent=5 // pred_region
        %s120 = ssub.s32 %s12, 1
        // Predicated region
        $region13: #{tpu_custom_call.1} parent=11 // pred_check
          %p121 = pneg %p59
        $region14: #{tpu_custom_call.1} parent=11 // pred_check_branch
          %123 = sbr.rel (%p121) target = $region16
        $region15: #{tpu_custom_call.1} parent=11 // pred_region
          _
        $region16: #{tpu_custom_call.1} parent=11 // pred_fallthru
          _
        // Predicated region
        $region17: #{tpu_custom_call.1} parent=11 // pred_check
          %p124 = pneg %p80
        $region18: #{tpu_custom_call.1} parent=11 // pred_check_branch
          %126 = sbr.rel (%p124) target = $region20
        $region19: #{tpu_custom_call.1} parent=11 // pred_region
          _
        $region20: #{tpu_custom_call.1} parent=11 // pred_fallthru
          _
      $region12: #{tpu_custom_call.1} parent=5 // pred_fallthru
        _
      %p127 = scmp.lt.s32.totalorder %s12, 8
      // Predicated region
      $region21: #{tpu_custom_call.1} parent=5 // pred_check
        %p128 = pneg %p127
      $region22: #{tpu_custom_call.1} parent=5 // pred_check_branch
        %130 = sbr.rel (%p128) target = $region24
      $region23: #{tpu_custom_call.1} parent=5 // pred_region
        // Predicated region
        $region25: #{tpu_custom_call.1} parent=23 // pred_check
          %p131 = pneg %p32
        $region26: #{tpu_custom_call.1} parent=23 // pred_check_branch
          %133 = sbr.rel (%p131) target = $region28
        $region27: #{tpu_custom_call.1} parent=23 // pred_region
          %p134 = scmp.lt.s32.totalorder %s12, 7
          %s135 = scalar_select %p134, %s12, 7
          %s136 = smul.addr %s135, 20
          %s137 = smul.addr %s136, 4
          %s138 = scalar_lea.vmem %s0, %s137
        $region28: #{tpu_custom_call.1} parent=23 // pred_fallthru
          _
      $region24: #{tpu_custom_call.1} parent=5 // pred_fallthru
        _
      %p139 = scmp.le.s32.totalorder 1, %s12
      %p140 = scmp.lt.s32.totalorder %s12, 9
      %p141 = pnand %p139, %p140
      %p142 = pneg %p141
      // Predicated region
      $region29: #{tpu_custom_call.1} parent=5 // pred_check
        _
      $region30: #{tpu_custom_call.1} parent=5 // pred_check_branch
        %144 = sbr.rel (%p141) target = $region32
      $region31: #{tpu_custom_call.1} parent=5 // pred_region
        %s145 = ssub.s32 %s12, 1
        %p146 = scmp.lt.s32.totalorder %s17, 7
        %s147 = scalar_select %p146, %s17, 7
        %s148 = smul.addr %s147, 20
        %s149 = smul.addr %s148, 4
        %s150 = scalar_lea.vmem %s0, %s149
        %p151 = pneg %p38
        %p152 = pneg %p35
        %p153 = pneg %p59
        %p154 = pneg %p56
        %p155 = pneg %p80
        %p156 = pneg %p77
        %p157 = pneg %p106
        %p158 = pneg %p103
        %s159 = sand.u32 %s93, 1
        %s160 = scalar_lea.sflag [#allocation3], %s159
        %s161 = sand.u32 %s93, 1
        %s162 = smul.addr %s161, 512
        %s163 = scalar_lea.vmem [#allocation2], %s162
        %p164 = scmp.lt.s32.totalorder %s17, 7
        %s165 = scalar_select %p164, %s17, 7
        %s166 = smul.addr %s165, 20
        %s167 = smul.addr %s166, 4
        %s168 = scalar_lea.vmem %s0, %s167
        %v170 = vld [vmem:[%s1] sm:$0xf]
        %v171 = vld [vmem:[%s1 + $0x4] sm:$0xf]
        %v172 = vld [vmem:[%s1 + $0x8] sm:$0xf]
        %v173 = vld [vmem:[%s1 + $0xc] sm:$0xf]
        %v174 = vld [vmem:[%s1 + $0x10] sm:$0xf]
        %v175 = vld [vmem:[%s1 + $0x14] sm:$0xf]
        %v176 = vld [vmem:[%s1 + $0x18] sm:$0xf]
        %v177 = vld [vmem:[%s1 + $0x1c] sm:$0xf]
        %v178 = vld [vmem:[%s1 + $0x20] sm:$0xf]
        %v179 = vld [vmem:[%s1 + $0x24] sm:$0xf]
        %v180 = vld [vmem:[%s1 + $0x28] sm:$0xf]
        %v181 = vld [vmem:[%s1 + $0x2c] sm:$0xf]
        %v182 = vld [vmem:[%s1 + $0x30] sm:$0xf]
        %v183 = vld [vmem:[%s1 + $0x34] sm:$0xf]
        %v184 = vld [vmem:[%s1 + $0x38] sm:$0xf]
        %v185 = vld [vmem:[%s1 + $0x3c] sm:$0xf]
        %v186 = vld [vmem:[%s168] sm:$0xff]
        %v187 = vld [vmem:[%s168 + $0x8] sm:$0xff]
        %v188 = vld [vmem:[%s168 + $0x10] sm:$0xff]
        %v189 = vld [vmem:[%s168 + $0x18] sm:$0xff]
        %v190 = vld [vmem:[%s168 + $0x20] sm:$0xff]
        %v191 = vld [vmem:[%s168 + $0x28] sm:$0xff]
        %v192 = vld [vmem:[%s168 + $0x30] sm:$0xff]
        %v193 = vld [vmem:[%s168 + $0x38] sm:$0xff]
        %v194 = vld [vmem:[%s168 + $0x40] sm:$0x33]
        %v195 = vld [vmem:[%s168 + $0x48] sm:$0x33]
        %v196 = vld [vmem:[%s2] sm:$0xff]
        %v197 = vld [vmem:[%s2 + $0x8] sm:$0xff]
        %v198 = vld [vmem:[%s2 + $0x10] sm:$0xff]
        %v199 = vld [vmem:[%s2 + $0x18] sm:$0xff]
        %v200 = vld [vmem:[%s2 + $0x20] sm:$0xff]
        %v201 = vld [vmem:[%s2 + $0x28] sm:$0xff]
        %v202 = vld [vmem:[%s2 + $0x30] sm:$0xff]
        %v203 = vld [vmem:[%s2 + $0x38] sm:$0xff]
        %v204 = vld [vmem:[%s2 + $0x40] sm:$0xff]
        %v205 = vld [vmem:[%s2 + $0x48] sm:$0xff]
        %v206 = vld [vmem:[%s2 + $0x50] sm:$0xff]
        %v207 = vld [vmem:[%s2 + $0x58] sm:$0xff]
        %v208 = vld [vmem:[%s2 + $0x60] sm:$0xff]
        %v209 = vld [vmem:[%s2 + $0x68] sm:$0xff]
        %v210 = vld [vmem:[%s2 + $0x70] sm:$0xff]
        %v211 = vld [vmem:[%s2 + $0x78] sm:$0xff]
        %213 = vset.pattern.permute.xlu0 0
        %214 = vperm.xlu0 %213, %v196
        %v215 = vpop.permute.xlu0 %214
        %218 = vset.pattern.permute.xlu0 0
        %219 = vperm.xlu0 %218, %v197
        %v220 = vpop.permute.xlu0 %219
        %223 = vset.pattern.permute.xlu0 0
        %224 = vperm.xlu0 %223, %v198
        %v225 = vpop.permute.xlu0 %224
        %228 = vset.pattern.permute.xlu0 0
        %229 = vperm.xlu0 %228, %v199
        %v230 = vpop.permute.xlu0 %229
        %233 = vset.pattern.permute.xlu0 0
        %234 = vperm.xlu0 %233, %v200
        %v235 = vpop.permute.xlu0 %234
        %238 = vset.pattern.permute.xlu0 0
        %239 = vperm.xlu0 %238, %v201
        %v240 = vpop.permute.xlu0 %239
        %243 = vset.pattern.permute.xlu0 0
        %244 = vperm.xlu0 %243, %v202
        %v245 = vpop.permute.xlu0 %244
        %248 = vset.pattern.permute.xlu0 0
        %249 = vperm.xlu0 %248, %v203
        %v250 = vpop.permute.xlu0 %249
        %253 = vset.pattern.permute.xlu0 0
        %254 = vperm.xlu0 %253, %v204
        %v255 = vpop.permute.xlu0 %254
        %258 = vset.pattern.permute.xlu0 0
        %259 = vperm.xlu0 %258, %v205
        %v260 = vpop.permute.xlu0 %259
        %263 = vset.pattern.permute.xlu0 0
        %264 = vperm.xlu0 %263, %v206
        %v265 = vpop.permute.xlu0 %264
        %268 = vset.pattern.permute.xlu0 0
        %269 = vperm.xlu0 %268, %v207
        %v270 = vpop.permute.xlu0 %269
        %273 = vset.pattern.permute.xlu0 0
        %274 = vperm.xlu0 %273, %v208
        %v275 = vpop.permute.xlu0 %274
        %278 = vset.pattern.permute.xlu0 0
        %279 = vperm.xlu0 %278, %v209
        %v280 = vpop.permute.xlu0 %279
        %283 = vset.pattern.permute.xlu0 0
        %284 = vperm.xlu0 %283, %v210
        %v285 = vpop.permute.xlu0 %284
        %288 = vset.pattern.permute.xlu0 0
        %289 = vperm.xlu0 %288, %v211
        %v290 = vpop.permute.xlu0 %289
        %v308 = vunpack.c.l.b16 %v170
        %v309 = vunpack.c.l.b16 %v171
        %v310 = vunpack.c.l.b16 %v172
        %v311 = vunpack.c.l.b16 %v173
        %v312 = vunpack.c.l.b16 %v174
        %v313 = vunpack.c.l.b16 %v175
        %v314 = vunpack.c.l.b16 %v176
        %v315 = vunpack.c.l.b16 %v177
        %v316 = vunpack.c.l.b16 %v178
        %v317 = vunpack.c.l.b16 %v179
        %v318 = vunpack.c.l.b16 %v180
        %v319 = vunpack.c.l.b16 %v181
        %v320 = vunpack.c.l.b16 %v182
        %v321 = vunpack.c.l.b16 %v183
        %v322 = vunpack.c.l.b16 %v184
        %v323 = vunpack.c.l.b16 %v185
        %v324 = vpack.c.b16 %v309, %v308
        %v325 = vpack.c.b16 %v311, %v310
        %v326 = vpack.c.b16 %v313, %v312
        %v327 = vpack.c.b16 %v315, %v314
        %v328 = vpack.c.b16 %v317, %v316
        %v329 = vpack.c.b16 %v319, %v318
        %v330 = vpack.c.b16 %v321, %v320
        %v331 = vpack.c.b16 %v323, %v322
        %v342 = vunpack.c.l.b16 %v186
        %v343 = vunpack.c.h.b16 %v186
        %v344 = vunpack.c.l.b16 %v187
        %v345 = vunpack.c.h.b16 %v187
        %v346 = vunpack.c.l.b16 %v188
        %v347 = vunpack.c.h.b16 %v188
        %v348 = vunpack.c.l.b16 %v189
        %v349 = vunpack.c.h.b16 %v189
        %v350 = vunpack.c.l.b16 %v190
        %v351 = vunpack.c.h.b16 %v190
        %v352 = vunpack.c.l.b16 %v191
        %v353 = vunpack.c.h.b16 %v191
        %v354 = vunpack.c.l.b16 %v192
        %v355 = vunpack.c.h.b16 %v192
        %v356 = vunpack.c.l.b16 %v193
        %v357 = vunpack.c.h.b16 %v193
        %v358 = vunpack.c.l.b16 %v194
        %v359 = vunpack.c.h.b16 %v194
        %v360 = vunpack.c.l.b16 %v195
        %v361 = vunpack.c.h.b16 %v195
        %v362 = vpack.c.b16 %v346, %v342
        %v363 = vpack.c.b16 %v347, %v343
        %v364 = vpack.c.b16 %v348, %v344
        %v365 = vpack.c.b16 %v349, %v345
        %v366 = vpack.c.b16 %v354, %v350
        %v367 = vpack.c.b16 %v355, %v351
        %v368 = vpack.c.b16 %v356, %v352
        %v369 = vpack.c.b16 %v357, %v353
        %v370 = vpack.c.b16 %v358, %v358
        %v371 = vpack.c.b16 %v359, %v359
        %v372 = vpack.c.b16 %v360, %v360
        %v373 = vpack.c.b16 %v361, %v361
        %vm382 = vcmask 293888
        %v384 = vsel %vm382, %v324, 0
        %v387 = vsel %vm382, %v325, 0
        %v390 = vsel %vm382, %v326, 0
        %v393 = vsel %vm382, %v327, 0
        %v396 = vsel %vm382, %v328, 0
        %v399 = vsel %vm382, %v329, 0
        %v402 = vsel %vm382, %v330, 0
        %v405 = vsel %vm382, %v331, 0
        %vm407 = vcmask 1041408
        %v409 = vsel %vm407, %v370, 0
        %v412 = vsel %vm407, %v371, 0
        %v415 = vsel %vm407, %v372, 0
        %v418 = vsel %vm407, %v373, 0
        %420 = vmatpush.bf16.msra.mxu0 0
        %421 = vmatpush.bf16.msra.mxu0 0
        %422 = vmatpush.bf16.msra.mxu0 0
        %423 = vmatpush.bf16.msra.mxu0 0
        %424 = vmatpush.bf16.msra.mxu0 0
        %425 = vmatpush.bf16.msra.mxu0 %v409
        %426 = vmatpush.bf16.msra.mxu0 %v366
        %427 = vmatpush.bf16.msra.mxu0 %v362
        %428 = vmatmul.bf16.gmra.mxu0 %v384
        %v429 = vpop.f32.mrf.mxu0
        %v430 = vadd.f32 %v215, %v429
        %v431 = vpop.f32.mrf.mxu0
        %v432 = vadd.f32 %v220, %v431
        %433 = vmatmul.bf16.gmra.mxu0 %v387
        %v434 = vpop.f32.mrf.mxu0
        %v435 = vadd.f32 %v225, %v434
        %v436 = vpop.f32.mrf.mxu0
        %v437 = vadd.f32 %v230, %v436
        %438 = vmatmul.bf16.gmra.mxu0 %v390
        %v439 = vpop.f32.mrf.mxu0
        %v440 = vadd.f32 %v235, %v439
        %v441 = vpop.f32.mrf.mxu0
        %v442 = vadd.f32 %v240, %v441
        %443 = vmatmul.bf16.gmra.mxu0 %v393
        %v444 = vpop.f32.mrf.mxu0
        %v445 = vadd.f32 %v245, %v444
        %v446 = vpop.f32.mrf.mxu0
        %v447 = vadd.f32 %v250, %v446
        %448 = vmatmul.bf16.gmra.mxu0 %v396
        %v449 = vpop.f32.mrf.mxu0
        %v450 = vadd.f32 %v255, %v449
        %v451 = vpop.f32.mrf.mxu0
        %v452 = vadd.f32 %v260, %v451
        %453 = vmatmul.bf16.gmra.mxu0 %v399
        %v454 = vpop.f32.mrf.mxu0
        %v455 = vadd.f32 %v265, %v454
        %v456 = vpop.f32.mrf.mxu0
        %v457 = vadd.f32 %v270, %v456
        %458 = vmatmul.bf16.gmra.mxu0 %v402
        %v459 = vpop.f32.mrf.mxu0
        %v460 = vadd.f32 %v275, %v459
        %v461 = vpop.f32.mrf.mxu0
        %v462 = vadd.f32 %v280, %v461
        %463 = vmatmul.bf16.gmra.mxu0 %v405
        %v464 = vpop.f32.mrf.mxu0
        %v465 = vadd.f32 %v285, %v464
        %v466 = vpop.f32.mrf.mxu0
        %v467 = vadd.f32 %v290, %v466
        %468 = vdwg.mxu0
        %469 = vmatpush.bf16.msra.mxu0 0
        %470 = vmatpush.bf16.msra.mxu0 0
        %471 = vmatpush.bf16.msra.mxu0 0
        %472 = vmatpush.bf16.msra.mxu0 0
        %473 = vmatpush.bf16.msra.mxu0 0
        %474 = vmatpush.bf16.msra.mxu0 %v412
        %475 = vmatpush.bf16.msra.mxu0 %v367
        %476 = vmatpush.bf16.msra.mxu0 %v363
        %477 = vmatmul.bf16.gmra.mxu0 %v384
        %v478 = vpop.f32.mrf.mxu0
        %v479 = vadd.f32 %v215, %v478
        %v480 = vpop.f32.mrf.mxu0
        %v481 = vadd.f32 %v220, %v480
        %482 = vmatmul.bf16.gmra.mxu0 %v387
        %v483 = vpop.f32.mrf.mxu0
        %v484 = vadd.f32 %v225, %v483
        %v485 = vpop.f32.mrf.mxu0
        %v486 = vadd.f32 %v230, %v485
        %487 = vmatmul.bf16.gmra.mxu0 %v390
        %v488 = vpop.f32.mrf.mxu0
        %v489 = vadd.f32 %v235, %v488
        %v490 = vpop.f32.mrf.mxu0
        %v491 = vadd.f32 %v240, %v490
        %492 = vmatmul.bf16.gmra.mxu0 %v393
        %v493 = vpop.f32.mrf.mxu0
        %v494 = vadd.f32 %v245, %v493
        %v495 = vpop.f32.mrf.mxu0
        %v496 = vadd.f32 %v250, %v495
        %497 = vmatmul.bf16.gmra.mxu0 %v396
        %v498 = vpop.f32.mrf.mxu0
        %v499 = vadd.f32 %v255, %v498
        %v500 = vpop.f32.mrf.mxu0
        %v501 = vadd.f32 %v260, %v500
        %502 = vmatmul.bf16.gmra.mxu0 %v399
        %v503 = vpop.f32.mrf.mxu0
        %v504 = vadd.f32 %v265, %v503
        %v505 = vpop.f32.mrf.mxu0
        %v506 = vadd.f32 %v270, %v505
        %507 = vmatmul.bf16.gmra.mxu0 %v402
        %v508 = vpop.f32.mrf.mxu0
        %v509 = vadd.f32 %v275, %v508
        %v510 = vpop.f32.mrf.mxu0
        %v511 = vadd.f32 %v280, %v510
        %512 = vmatmul.bf16.gmra.mxu0 %v405
        %v513 = vpop.f32.mrf.mxu0
        %v514 = vadd.f32 %v285, %v513
        %v515 = vpop.f32.mrf.mxu0
        %v516 = vadd.f32 %v290, %v515
        %517 = vdwg.mxu0
        %518 = vmatpush.bf16.msra.mxu0 0
        %519 = vmatpush.bf16.msra.mxu0 0
        %520 = vmatpush.bf16.msra.mxu0 0
        %521 = vmatpush.bf16.msra.mxu0 0
        %522 = vmatpush.bf16.msra.mxu0 0
        %523 = vmatpush.bf16.msra.mxu0 %v415
        %524 = vmatpush.bf16.msra.mxu0 %v368
        %525 = vmatpush.bf16.msra.mxu0 %v364
        %526 = vmatmul.bf16.gmra.mxu0 %v384
        %v527 = vpop.f32.mrf.mxu0
        %v528 = vadd.f32 %v215, %v527
        %v529 = vpop.f32.mrf.mxu0
        %v530 = vadd.f32 %v220, %v529
        %531 = vmatmul.bf16.gmra.mxu0 %v387
        %v532 = vpop.f32.mrf.mxu0
        %v533 = vadd.f32 %v225, %v532
        %v534 = vpop.f32.mrf.mxu0
        %v535 = vadd.f32 %v230, %v534
        %536 = vmatmul.bf16.gmra.mxu0 %v390
        %v537 = vpop.f32.mrf.mxu0
        %v538 = vadd.f32 %v235, %v537
        %v539 = vpop.f32.mrf.mxu0
        %v540 = vadd.f32 %v240, %v539
        %541 = vmatmul.bf16.gmra.mxu0 %v393
        %v542 = vpop.f32.mrf.mxu0
        %v543 = vadd.f32 %v245, %v542
        %v544 = vpop.f32.mrf.mxu0
        %v545 = vadd.f32 %v250, %v544
        %546 = vmatmul.bf16.gmra.mxu0 %v396
        %v547 = vpop.f32.mrf.mxu0
        %v548 = vadd.f32 %v255, %v547
        %v549 = vpop.f32.mrf.mxu0
        %v550 = vadd.f32 %v260, %v549
        %551 = vmatmul.bf16.gmra.mxu0 %v399
        %v552 = vpop.f32.mrf.mxu0
        %v553 = vadd.f32 %v265, %v552
        %v554 = vpop.f32.mrf.mxu0
        %v555 = vadd.f32 %v270, %v554
        %556 = vmatmul.bf16.gmra.mxu0 %v402
        %v557 = vpop.f32.mrf.mxu0
        %v558 = vadd.f32 %v275, %v557
        %v559 = vpop.f32.mrf.mxu0
        %v560 = vadd.f32 %v280, %v559
        %561 = vmatmul.bf16.gmra.mxu0 %v405
        %v562 = vpop.f32.mrf.mxu0
        %v563 = vadd.f32 %v285, %v562
        %v564 = vpop.f32.mrf.mxu0
        %v565 = vadd.f32 %v290, %v564
        %566 = vdwg.mxu0
        %567 = vmatpush.bf16.msra.mxu0 0
        %568 = vmatpush.bf16.msra.mxu0 0
        %569 = vmatpush.bf16.msra.mxu0 0
        %570 = vmatpush.bf16.msra.mxu0 0
        %571 = vmatpush.bf16.msra.mxu0 0
        %572 = vmatpush.bf16.msra.mxu0 %v418
        %573 = vmatpush.bf16.msra.mxu0 %v369
        %574 = vmatpush.bf16.msra.mxu0 %v365
        %575 = vmatmul.bf16.gmra.mxu0 %v384
        %v576 = vpop.f32.mrf.mxu0
        %v577 = vadd.f32 %v215, %v576
        %v578 = vpop.f32.mrf.mxu0
        %v579 = vadd.f32 %v220, %v578
        %580 = vmatmul.bf16.gmra.mxu0 %v387
        %v581 = vpop.f32.mrf.mxu0
        %v582 = vadd.f32 %v225, %v581
        %v583 = vpop.f32.mrf.mxu0
        %v584 = vadd.f32 %v230, %v583
        %585 = vmatmul.bf16.gmra.mxu0 %v390
        %v586 = vpop.f32.mrf.mxu0
        %v587 = vadd.f32 %v235, %v586
        %v588 = vpop.f32.mrf.mxu0
        %v589 = vadd.f32 %v240, %v588
        %590 = vmatmul.bf16.gmra.mxu0 %v393
        %v591 = vpop.f32.mrf.mxu0
        %v592 = vadd.f32 %v245, %v591
        %v593 = vpop.f32.mrf.mxu0
        %v594 = vadd.f32 %v250, %v593
        %595 = vmatmul.bf16.gmra.mxu0 %v396
        %v596 = vpop.f32.mrf.mxu0
        %v597 = vadd.f32 %v255, %v596
        %v598 = vpop.f32.mrf.mxu0
        %v599 = vadd.f32 %v260, %v598
        %600 = vmatmul.bf16.gmra.mxu0 %v399
        %v601 = vpop.f32.mrf.mxu0
        %v602 = vadd.f32 %v265, %v601
        %v603 = vpop.f32.mrf.mxu0
        %v604 = vadd.f32 %v270, %v603
        %605 = vmatmul.bf16.gmra.mxu0 %v402
        %v606 = vpop.f32.mrf.mxu0
        %v607 = vadd.f32 %v275, %v606
        %v608 = vpop.f32.mrf.mxu0
        %v609 = vadd.f32 %v280, %v608
        %610 = vmatmul.bf16.gmra.mxu0 %v405
        %v611 = vpop.f32.mrf.mxu0
        %v612 = vadd.f32 %v285, %v611
        %v613 = vpop.f32.mrf.mxu0
        %v614 = vadd.f32 %v290, %v613
        %615 = vdwg.mxu0
        %616 = vst [vmem:[%s163] sm:$0xff] %v430
        %617 = vst [vmem:[%s163 + $0x8] sm:$0xff] %v479
        %618 = vst [vmem:[%s163 + $0x10] sm:$0xff] %v528
        %619 = vst [vmem:[%s163 + $0x18] sm:$0xff] %v577
        %620 = vst [vmem:[%s163 + $0x20] sm:$0xff] %v432
        %621 = vst [vmem:[%s163 + $0x28] sm:$0xff] %v481
        %622 = vst [vmem:[%s163 + $0x30] sm:$0xff] %v530
        %623 = vst [vmem:[%s163 + $0x38] sm:$0xff] %v579
        %624 = vst [vmem:[%s163 + $0x40] sm:$0xff] %v435
        %625 = vst [vmem:[%s163 + $0x48] sm:$0xff] %v484
        %626 = vst [vmem:[%s163 + $0x50] sm:$0xff] %v533
        %627 = vst [vmem:[%s163 + $0x58] sm:$0xff] %v582
        %628 = vst [vmem:[%s163 + $0x60] sm:$0xff] %v437
        %629 = vst [vmem:[%s163 + $0x68] sm:$0xff] %v486
        %630 = vst [vmem:[%s163 + $0x70] sm:$0xff] %v535
        %631 = vst [vmem:[%s163 + $0x78] sm:$0xff] %v584
        %632 = vst [vmem:[%s163 + $0x80] sm:$0xff] %v440
        %633 = vst [vmem:[%s163 + $0x88] sm:$0xff] %v489
        %634 = vst [vmem:[%s163 + $0x90] sm:$0xff] %v538
        %635 = vst [vmem:[%s163 + $0x98] sm:$0xff] %v587
        %636 = vst [vmem:[%s163 + $0xa0] sm:$0xff] %v442
        %637 = vst [vmem:[%s163 + $0xa8] sm:$0xff] %v491
        %638 = vst [vmem:[%s163 + $0xb0] sm:$0xff] %v540
        %639 = vst [vmem:[%s163 + $0xb8] sm:$0xff] %v589
        %640 = vst [vmem:[%s163 + $0xc0] sm:$0xff] %v445
        %641 = vst [vmem:[%s163 + $0xc8] sm:$0xff] %v494
        %642 = vst [vmem:[%s163 + $0xd0] sm:$0xff] %v543
        %643 = vst [vmem:[%s163 + $0xd8] sm:$0xff] %v592
        %644 = vst [vmem:[%s163 + $0xe0] sm:$0xff] %v447
        %645 = vst [vmem:[%s163 + $0xe8] sm:$0xff] %v496
        %646 = vst [vmem:[%s163 + $0xf0] sm:$0xff] %v545
        %647 = vst [vmem:[%s163 + $0xf8] sm:$0xff] %v594
        %648 = vst [vmem:[%s163 + $0x100] sm:$0xff] %v450
        %649 = vst [vmem:[%s163 + $0x108] sm:$0xff] %v499
        %650 = vst [vmem:[%s163 + $0x110] sm:$0xff] %v548
        %651 = vst [vmem:[%s163 + $0x118] sm:$0xff] %v597
        %652 = vst [vmem:[%s163 + $0x120] sm:$0xff] %v452
        %653 = vst [vmem:[%s163 + $0x128] sm:$0xff] %v501
        %654 = vst [vmem:[%s163 + $0x130] sm:$0xff] %v550
        %655 = vst [vmem:[%s163 + $0x138] sm:$0xff] %v599
        %656 = vst [vmem:[%s163 + $0x140] sm:$0xff] %v455
        %657 = vst [vmem:[%s163 + $0x148] sm:$0xff] %v504
        %658 = vst [vmem:[%s163 + $0x150] sm:$0xff] %v553
        %659 = vst [vmem:[%s163 + $0x158] sm:$0xff] %v602
        %660 = vst [vmem:[%s163 + $0x160] sm:$0xff] %v457
        %661 = vst [vmem:[%s163 + $0x168] sm:$0xff] %v506
        %662 = vst [vmem:[%s163 + $0x170] sm:$0xff] %v555
        %663 = vst [vmem:[%s163 + $0x178] sm:$0xff] %v604
        %664 = vst [vmem:[%s163 + $0x180] sm:$0xff] %v460
        %665 = vst [vmem:[%s163 + $0x188] sm:$0xff] %v509
        %666 = vst [vmem:[%s163 + $0x190] sm:$0xff] %v558
        %667 = vst [vmem:[%s163 + $0x198] sm:$0xff] %v607
        %668 = vst [vmem:[%s163 + $0x1a0] sm:$0xff] %v462
        %669 = vst [vmem:[%s163 + $0x1a8] sm:$0xff] %v511
        %670 = vst [vmem:[%s163 + $0x1b0] sm:$0xff] %v560
        %671 = vst [vmem:[%s163 + $0x1b8] sm:$0xff] %v609
        %672 = vst [vmem:[%s163 + $0x1c0] sm:$0xff] %v465
        %673 = vst [vmem:[%s163 + $0x1c8] sm:$0xff] %v514
        %674 = vst [vmem:[%s163 + $0x1d0] sm:$0xff] %v563
        %675 = vst [vmem:[%s163 + $0x1d8] sm:$0xff] %v612
        %676 = vst [vmem:[%s163 + $0x1e0] sm:$0xff] %v467
        %677 = vst [vmem:[%s163 + $0x1e8] sm:$0xff] %v516
        %678 = vst [vmem:[%s163 + $0x1f0] sm:$0xff] %v565
        %679 = vst [vmem:[%s163 + $0x1f8] sm:$0xff] %v614
        %s680 = sand.u32 %s93, 1
        %s681 = scalar_lea.sflag [#allocation3], %s680
        %s682 = sand.u32 %s93, 1
        %s683 = smul.addr %s682, 512
        %s684 = scalar_lea.vmem [#allocation2], %s683
        // Predicated region
        $region33: #{tpu_custom_call.1} parent=31 // pred_check
          %p685 = pneg %p103
        $region34: #{tpu_custom_call.1} parent=31 // pred_check_branch
          %687 = sbr.rel (%p685) target = $region36
        $region35: #{tpu_custom_call.1} parent=31 // pred_region
          %689 = vsyncadd %s681, 0
          %s690 = smul.addr %s17, 64
          %s691 = smul.addr %s690, 8
          %s692 = scalar_lea.hbm %s3, %s691
          %s693 = sshll.u32 %s684, 4
          %s694 = int_to_ptr.vmem [resolvable:$true] %s693
          %s695 = sshll.u32 %s692, 4
          %s696 = int_to_ptr.hbm [resolvable:$true] %s695
          %701 = dma.vmem_to_hbm [thread:$0]  %s694, 8192, %s696, %s681, 512, 512, 32
        $region36: #{tpu_custom_call.1} parent=31 // pred_fallthru
          _
      $region32: #{tpu_custom_call.1} parent=5 // pred_fallthru
        _
      %p702 = scmp.le.s32.totalorder 2, %s12
      // Predicated region
      $region37: #{tpu_custom_call.1} parent=5 // pred_check
        %p703 = pneg %p702
      $region38: #{tpu_custom_call.1} parent=5 // pred_check_branch
        %705 = sbr.rel (%p703) target = $region40
      $region39: #{tpu_custom_call.1} parent=5 // pred_region
        %s706 = ssub.s32 %s12, 2
        // Predicated region
        $region41: #{tpu_custom_call.1} parent=39 // pred_check
          %p707 = pneg %p109
        $region42: #{tpu_custom_call.1} parent=39 // pred_check_branch
          %709 = sbr.rel (%p707) target = $region44
        $region43: #{tpu_custom_call.1} parent=39 // pred_region
          %s710 = sand.u32 %s94, 1
          %s711 = scalar_lea.sflag [#allocation3], %s710
          %s712 = sand.u32 %s94, 1
          %s713 = smul.addr %s712, 512
          %s714 = scalar_lea.vmem [#allocation2], %s713
          %716 = dma.done %s711, 8192
        $region44: #{tpu_custom_call.1} parent=39 // pred_fallthru
          _
      $region40: #{tpu_custom_call.1} parent=5 // pred_fallthru
        _
    $region6: #{tpu_custom_call.1} parent=1 // loop_footer
      %s16 = sadd.s32 1, %s12
    $region7: #{tpu_custom_call.1} parent=1 // loop_footer_branch
      %11 = sbr.rel target = $region3
    $region8: #{tpu_custom_call.1} parent=1 // loop_exit
      _
    %717 = vsyncpa [#allocation3], 1
    %s718 = scalar_lea.sflag [#allocation3], 1
    %719 = vsyncpa %s718, 1

</llo_original>
